<compile_context>
chip_gen: v6e
topology: v6e:2x2x1
jax: 0.10.0
libtpu: 0.0.40
codegen_flags: <defaults>
</compile_context>

<pallas_src>
import functools

import jax
import jax.numpy as jnp
from jax.experimental import pallas as pl
from jax.experimental.pallas import tpu as pltpu


def _round_up(n, m):
    return ((n + m - 1) // m) * m


def _pad2d(x, rows, cols):
    pr, pc = rows - x.shape[0], cols - x.shape[1]
    if pr == 0 and pc == 0:
        return x
    return jnp.pad(x, ((0, pr), (0, pc)))


def _token_tile(np_tokens, tb, k_dim, tile_bytes_target=2 << 20):
    """Largest token tile that (a) divides Np, (b) is a multiple of 8 (or the
    full axis), and (c) keeps one bf16 patch tile at a ~MiB scale."""
    max_tn = max(8, tile_bytes_target // max(1, tb * k_dim * 2))
    if np_tokens <= max_tn:
        return np_tokens
    tn = (min(max_tn, np_tokens) // 8) * 8
    while tn >= 8:
        if np_tokens % tn == 0:
            return tn
        tn -= 8
    return np_tokens  # fall back to the full (un-tiled) token axis


# ---------------------------------------------------------------------------
# Fused kernel.
#
# Grid: (Bp // TB, Np // TN); axis 0 "parallel" (megacore batch sharding),
#       axis 1 "arbitrary" (reduction over token tiles; output block resident).
#
#   patches_ref : (TB, TN, K)  bf16  raw im2col patch rows (K unpadded)
#   w_pe_ref    : (K, Dp)      f32   patch-embed weight (D zero-padded)
#   b_pe_ref    : (1, Dp)      f32   patch-embed bias
#   w_cls_ref   : (Dp, NCp)    bf16  classifier weight (zero-padded)
#   b_cls_ref   : (1, NCp)     f32   classifier bias
#   out_ref     : (TB, NCp)    f32   logits for this batch block
#   acc_ref     : (TB, K)      f32   per-image raw-patch token-sum accumulator
# ---------------------------------------------------------------------------
def fused_reid_kernel(patches_ref, w_pe_ref, b_pe_ref, w_cls_ref, b_cls_ref,
                      out_ref, acc_ref, *, inv_tokens):
    t = pl.program_id(1)

    @pl.when(t == 0)
    def _init():
        acc_ref[...] = jnp.zeros_like(acc_ref)

    # Streaming token-sum of raw patch rows (sublane reduce, f32 accumulation).
    # No MXU work per tile: mean pooling commutes with the linear patch embed.
    acc_ref[...] += jnp.sum(patches_ref[...].astype(jnp.float32), axis=1)

    @pl.when(t == pl.num_programs(1) - 1)
    def _finalize():
        mean_patch = acc_ref[...] * inv_tokens                       # (TB, K)
        # Patch embedding applied once to the pooled patch rows (tiny matmul).
        feats = (jnp.dot(mean_patch, w_pe_ref[...],
                         preferred_element_type=jnp.float32)
                 + b_pe_ref[...])                                    # (TB, Dp)
        # nn.Dropout(0.5) -> identity in eval mode.
        logits = (jnp.dot(feats.astype(jnp.bfloat16), w_cls_ref[...],
                          preferred_element_type=jnp.float32)
                  + b_cls_ref[...])                                  # (TB, NCp)
        out_ref[...] = logits


def animal_reid_forward(x_nchw, params, patch_size=4):
    """Forward pass. x_nchw: (B, C, H, W) float32 -> logits (B, NC) float32."""
    w_pe, b_pe = params["w_pe"], params["b_pe"]
    w_cls, b_cls = params["w_cls"], params["b_cls"]

    B, C, H, W = x_nchw.shape
    P = patch_size
    Hp, Wp = H // P, W // P
    Np = Hp * Wp
    K = P * P * C                    # left UNpadded (mem-bound: compact bytes)
    D = w_pe.shape[1]
    NC = w_cls.shape[1]

    Dp = _round_up(D, 128)
    NCp = _round_up(NC, 128)

    # Batch blocking: TB == B (block equals full dim) or a multiple of 8.
    TB = 8 if B >= 8 else B
    Bp = _round_up(B, TB)

    # Single fused NCHW -> im2col transform + bf16 cast (one XLA copy; the
    # cast fuses into it and halves the kernel's dominant HBM read traffic).
    patches = (
        x_nchw.reshape(B, C, Hp, P, Wp, P)
        .transpose(0, 2, 4, 3, 5, 1)             # (B, Hp, Wp, P, P, C)
        .reshape(B, Np, K)
        .astype(jnp.bfloat16)
    )
    if Bp != B:
        patches = jnp.pad(patches, ((0, Bp - B), (0, 0), (0, 0)))

    # Lane-dense padded parameters. Classifier weight kept bf16-resident
    # (f32 accumulation) so Dp*NCp residency stays inside v7x's 64 MiB VMEM.
    w_pe_p = _pad2d(w_pe, K, Dp).astype(jnp.float32)
    b_pe_p = _pad2d(b_pe, 1, Dp).astype(jnp.float32)
    w_cls_p = _pad2d(w_cls, Dp, NCp).astype(jnp.bfloat16)
    b_cls_p = _pad2d(b_cls, 1, NCp).astype(jnp.float32)

    TN = _token_tile(Np, TB, K)
    n_token_tiles = Np // TN
    n_batch_blocks = Bp // TB

    flops = (Bp * Np * K                       # streaming token-sum
             + 2 * Bp * K * Dp                 # pooled patch-embed matmul
             + 2 * Bp * Dp * NCp)              # classifier matmul
    bytes_accessed = (Bp * Np * K * 2 + K * Dp * 4 + Dp * 4
                      + Dp * NCp * 2 + NCp * 4 + Bp * NCp * 4)

    vmem_est = (
        2 * TB * TN * K * 2           # double-buffered patch tile (bf16)
        + 2 * K * Dp * 4              # resident patch-embed weight
        + 2 * 8 * Dp * 4              # patch-embed bias (sublane-padded)
        + 2 * Dp * NCp * 2            # resident classifier weight (bf16)
        + 2 * 8 * NCp * 4             # classifier bias
        + 2 * max(TB, 8) * NCp * 4    # output block
        + max(TB, 8) * 128 * 4        # accumulator scratch (lane-padded)
    )
    # Sized from the actual buffers; capped at 48 MiB so it is safe on every
    # generation (v7x has 64 MiB physical VMEM per core).
    vmem_limit = int(min(max(int(1.5 * vmem_est), 8 << 20), 48 << 20))

    kernel = functools.partial(fused_reid_kernel, inv_tokens=1.0 / Np)

    logits_padded = pl.pallas_call(
        kernel,
        out_shape=jax.ShapeDtypeStruct((Bp, NCp), jnp.float32),
        grid_spec=pltpu.PrefetchScalarGridSpec(
            num_scalar_prefetch=0,
            grid=(n_batch_blocks, n_token_tiles),
            in_specs=[
                pl.BlockSpec((TB, TN, K), lambda b, t: (b, t, 0)),
                pl.BlockSpec((K, Dp), lambda b, t: (0, 0)),
                pl.BlockSpec((1, Dp), lambda b, t: (0, 0)),
                pl.BlockSpec((Dp, NCp), lambda b, t: (0, 0)),
                pl.BlockSpec((1, NCp), lambda b, t: (0, 0)),
            ],
            out_specs=pl.BlockSpec((TB, NCp), lambda b, t: (b, 0)),
            scratch_shapes=[pltpu.VMEM((TB, K), jnp.float32)],
        ),
        compiler_params=pltpu.CompilerParams(
            dimension_semantics=("parallel", "arbitrary"),
            vmem_limit_bytes=vmem_limit,
        ),
        cost_estimate=pl.CostEstimate(
            flops=flops, transcendentals=0, bytes_accessed=bytes_accessed
        ),
    )(patches, w_pe_p, b_pe_p, w_cls_p, b_cls_p)

    return logits_padded[:B, :NC]


def reference_forward(x_nchw, params, patch_size=4):
    """Pure-JAX f32 reference with the original (un-commuted) op order."""
    B, C, H, W = x_nchw.shape
    P = patch_size
    Hp, Wp = H // P, W // P
    patches = (
        x_nchw.reshape(B, C, Hp, P, Wp, P)
        .transpose(0, 2, 4, 3, 5, 1)
        .reshape(B, Hp * Wp, P * P * C)
    )
    tokens = patches @ params["w_pe"] + params["b_pe"]     # (B, Np, D)
    feats = tokens.mean(axis=1)                            # (B, D)
    return feats @ params["w_cls"] + params["b_cls"]       # (B, NC)


def init_params(key, in_chans, patch_size, embed_dim, num_classes):
    k1, k2, k3, k4 = jax.random.split(key, 4)
    pdim = patch_size * patch_size * in_chans
    return {
        "w_pe": 0.02 * jax.random.normal(k1, (pdim, embed_dim), jnp.float32),
        "b_pe": 0.01 * jax.random.normal(k2, (1, embed_dim), jnp.float32),
        "w_cls": 0.02 * jax.random.normal(k3, (embed_dim, num_classes), jnp.float32),
        "b_cls": 0.01 * jax.random.normal(k4, (1, num_classes), jnp.float32),
    }


if __name__ == "__main__":
    key = jax.random.PRNGKey(0)
    kx, kp = jax.random.split(key)

    # Small shapes consistent with the module's forward: NCHW RGB image,
    # 16x16 spatial, patch 4 -> 16 tokens, embed_dim 32, num_classes 8.
    B, C, H, W = 2, 3, 16, 16
    PATCH = 4
    EMBED_DIM = 32
    NUM_CLASSES = 8

    x = jax.random.normal(kx, (B, C, H, W), jnp.float32)
    params = init_params(kp, C, PATCH, EMBED_DIM, NUM_CLASSES)

    fwd = jax.jit(functools.partial(animal_reid_forward, patch_size=PATCH))
    logits = jax.block_until_ready(fwd(x, params))

    assert logits.shape == (B, NUM_CLASSES)
    assert logits.dtype == jnp.float32
    assert bool(jnp.all(jnp.isfinite(logits)))

    # Tolerance covers bf16 patch / classifier-weight casts (f32 accumulation).
    ref = reference_forward(x, params, patch_size=PATCH)
    assert bool(jnp.allclose(logits, ref, rtol=5e-2, atol=2e-3)), (
        "kernel logits diverge from f32 reference"
    )
    print("KERNEL_OK")
</pallas_src>

<mosaic_0001>
module attributes {stable_mosaic.version = 11 : i64} {
  func.func @fused_reid_kernel(%arg0: i32, %arg1: i32, %arg2: memref<2x16x48xbf16, #tpu.memory_space<vmem>>, %arg3: memref<48x128xf32, #tpu.memory_space<vmem>>, %arg4: memref<1x128xf32, #tpu.memory_space<vmem>>, %arg5: memref<128x128xbf16, #tpu.memory_space<vmem>>, %arg6: memref<1x128xf32, #tpu.memory_space<vmem>>, %arg7: memref<2x128xf32, #tpu.memory_space<vmem>>, %arg8: memref<2x48xf32, #tpu.memory_space<vmem>>) attributes {dimension_semantics = [#tpu.dimension_semantics<parallel>, #tpu.dimension_semantics<arbitrary>], iteration_bounds = array<i64: 1, 1>, scalar_prefetch = 0 : i64, scratch_operands = 1 : i64, tpu.core_type = #tpu.core_type<tc>, window_params = [{transform_indices = @transform_0, window_bounds = array<i64: 2, 16, 48>}, {pipeline_mode = #tpu.pipeline_mode<synchronous>, transform_indices = @transform_1, window_bounds = array<i64: 48, 128>}, {pipeline_mode = #tpu.pipeline_mode<synchronous>, transform_indices = @transform_2, window_bounds = array<i64: 1, 128>}, {pipeline_mode = #tpu.pipeline_mode<synchronous>, transform_indices = @transform_3, window_bounds = array<i64: 128, 128>}, {pipeline_mode = #tpu.pipeline_mode<synchronous>, transform_indices = @transform_4, window_bounds = array<i64: 1, 128>}, {transform_indices = @transform_5, window_bounds = array<i64: 2, 128>}]} {
    %c0_i32 = arith.constant 0 : i32
    %0 = arith.cmpi eq, %arg1, %c0_i32 : i32
    %1 = arith.extui %0 : i1 to i32
    %c0_i32_0 = arith.constant 0 : i32
    %2 = arith.cmpi ne, %1, %c0_i32_0 : i32
    scf.if %2 {
      %cst_9 = arith.constant 0.000000e+00 : f32
      %12 = vector.broadcast %cst_9 : f32 to vector<2x48xf32>
      %c0_10 = arith.constant 0 : index
      %c0_11 = arith.constant 0 : index
      %13 = vector.load %arg8[%c0_10, %c0_11] : memref<2x48xf32, #tpu.memory_space<vmem>>, vector<2x48xf32>
      tpu.vector_store %arg8[%c0_10, %c0_11], %12 {strides = array<i32>} : memref<2x48xf32, #tpu.memory_space<vmem>>, vector<2x48xf32>,
    } else {
    }
    %c0 = arith.constant 0 : index
    %c0_1 = arith.constant 0 : index
    %3 = vector.load %arg8[%c0, %c0_1] : memref<2x48xf32, #tpu.memory_space<vmem>>, vector<2x48xf32>
    %c0_2 = arith.constant 0 : index
    %c0_3 = arith.constant 0 : index
    %c0_4 = arith.constant 0 : index
    %4 = vector.load %arg2[%c0_2, %c0_3, %c0_4] : memref<2x16x48xbf16, #tpu.memory_space<vmem>>, vector<2x16x48xbf16>
    %5 = arith.extf %4 : vector<2x16x48xbf16> to vector<2x16x48xf32>
    %cst = arith.constant dense<0.000000e+00> : vector<2x48xf32>
    %6 = vector.multi_reduction <add>, %5, %cst [1] : vector<2x16x48xf32> to vector<2x48xf32>
    %7 = arith.addf %3, %6 : vector<2x48xf32>
    %c0_5 = arith.constant 0 : index
    %c0_6 = arith.constant 0 : index
    %8 = vector.load %arg8[%c0_5, %c0_6] : memref<2x48xf32, #tpu.memory_space<vmem>>, vector<2x48xf32>
    tpu.vector_store %arg8[%c0_5, %c0_6], %7 {strides = array<i32>} : memref<2x48xf32, #tpu.memory_space<vmem>>, vector<2x48xf32>,
    %c0_i32_7 = arith.constant 0 : i32
    %9 = arith.cmpi eq, %arg1, %c0_i32_7 : i32
    %10 = arith.extui %9 : i1 to i32
    %c0_i32_8 = arith.constant 0 : i32
    %11 = arith.cmpi ne, %10, %c0_i32_8 : i32
    scf.if %11 {
      %c0_9 = arith.constant 0 : index
      %c0_10 = arith.constant 0 : index
      %12 = vector.load %arg8[%c0_9, %c0_10] : memref<2x48xf32, #tpu.memory_space<vmem>>, vector<2x48xf32>
      %cst_11 = arith.constant 6.250000e-02 : f32
      %13 = vector.broadcast %cst_11 : f32 to vector<2x48xf32>
      %14 = arith.mulf %12, %13 : vector<2x48xf32>
      %c0_12 = arith.constant 0 : index
      %c0_13 = arith.constant 0 : index
      %15 = vector.load %arg3[%c0_12, %c0_13] : memref<48x128xf32, #tpu.memory_space<vmem>>, vector<48x128xf32>
      %cst_14 = arith.constant dense<0.000000e+00> : vector<2x128xf32>
      %16 = tpu.matmul %14, %15, %cst_14 {dimension_numbers = #tpu.dot_dimension_numbers<[1], [0], [0], [1], [0, 0, 1, 1], [], []>} : vector<2x48xf32>, vector<48x128xf32>, vector<2x128xf32> -> vector<2x128xf32>
      %c0_15 = arith.constant 0 : index
      %c0_16 = arith.constant 0 : index
      %17 = vector.load %arg4[%c0_15, %c0_16] : memref<1x128xf32, #tpu.memory_space<vmem>>, vector<1x128xf32>
      %18 = vector.broadcast %17 : vector<1x128xf32> to vector<2x128xf32>
      %19 = arith.addf %16, %18 : vector<2x128xf32>
      %20 = arith.truncf %19 : vector<2x128xf32> to vector<2x128xbf16>
      %c0_17 = arith.constant 0 : index
      %c0_18 = arith.constant 0 : index
      %21 = vector.load %arg5[%c0_17, %c0_18] : memref<128x128xbf16, #tpu.memory_space<vmem>>, vector<128x128xbf16>
      %cst_19 = arith.constant dense<0.000000e+00> : vector<2x128xf32>
      %22 = tpu.matmul %20, %21, %cst_19 {dimension_numbers = #tpu.dot_dimension_numbers<[1], [0], [0], [1], [0, 0, 1, 1], [], []>} : vector<2x128xbf16>, vector<128x128xbf16>, vector<2x128xf32> -> vector<2x128xf32>
      %c0_20 = arith.constant 0 : index
      %c0_21 = arith.constant 0 : index
      %23 = vector.load %arg6[%c0_20, %c0_21] : memref<1x128xf32, #tpu.memory_space<vmem>>, vector<1x128xf32>
      %24 = vector.broadcast %23 : vector<1x128xf32> to vector<2x128xf32>
      %25 = arith.addf %22, %24 : vector<2x128xf32>
      %c0_22 = arith.constant 0 : index
      %c0_23 = arith.constant 0 : index
      %26 = vector.load %arg7[%c0_22, %c0_23] : memref<2x128xf32, #tpu.memory_space<vmem>>, vector<2x128xf32>
      tpu.vector_store %arg7[%c0_22, %c0_23], %25 {strides = array<i32>} : memref<2x128xf32, #tpu.memory_space<vmem>>, vector<2x128xf32>,
    } else {
    }
    return
  }
  func.func @transform_0(%arg0: i32, %arg1: i32) -> (i32, i32, i32) {
    %c0_i32 = arith.constant 0 : i32
    %c0_i32_0 = arith.constant 0 : i32
    return %arg0, %arg1, %c0_i32 : i32, i32, i32
  }
  func.func @transform_1(%arg0: i32, %arg1: i32) -> (i32, i32) {
    %c0_i32 = arith.constant 0 : i32
    %c0_i32_0 = arith.constant 0 : i32
    %c0_i32_1 = arith.constant 0 : i32
    return %c0_i32, %c0_i32_0 : i32, i32
  }
  func.func @transform_2(%arg0: i32, %arg1: i32) -> (i32, i32) {
    %c0_i32 = arith.constant 0 : i32
    %c0_i32_0 = arith.constant 0 : i32
    %c0_i32_1 = arith.constant 0 : i32
    return %c0_i32, %c0_i32_0 : i32, i32
  }
  func.func @transform_3(%arg0: i32, %arg1: i32) -> (i32, i32) {
    %c0_i32 = arith.constant 0 : i32
    %c0_i32_0 = arith.constant 0 : i32
    %c0_i32_1 = arith.constant 0 : i32
    return %c0_i32, %c0_i32_0 : i32, i32
  }
  func.func @transform_4(%arg0: i32, %arg1: i32) -> (i32, i32) {
    %c0_i32 = arith.constant 0 : i32
    %c0_i32_0 = arith.constant 0 : i32
    %c0_i32_1 = arith.constant 0 : i32
    return %c0_i32, %c0_i32_0 : i32, i32
  }
  func.func @transform_5(%arg0: i32, %arg1: i32) -> (i32, i32) {
    %c0_i32 = arith.constant 0 : i32
    %c0_i32_0 = arith.constant 0 : i32
    return %arg0, %c0_i32 : i32, i32
  }
}

</mosaic_0001>

<llo_original>
// kernel: animal_reid_forward.1
$region0: #{animal_reid_forward.1}
  #allocation0 [shape = 'u32[]', space=smem, size = 0x4, offset = 0x4, fixed_abs, tag = 'smem constant byte address 0x4 - core index']
  #allocation1 [shape = 'u32[144,128]{1,0:T(1,128)}', space=vmem, size = 0x12000, scoped, tag = 'internal scratch']
  #allocation2 [shape = 'f32[2,48]{1,0:T(2,128)}', space=vmem, size = 0x400, scoped, tag = 'scratch operand']
  %s0 = inlined_call_operand.vmem [shape: bf16[2,16,48], index: 0, kind: input, shape index: {}]
  %s1 = inlined_call_operand.vmem [shape: f32[48,128], index: 1, kind: input, shape index: {}]
  %s2 = inlined_call_operand.vmem [shape: f32[1,128], index: 2, kind: input, shape index: {}]
  %s3 = inlined_call_operand.vmem [shape: bf16[128,128], index: 3, kind: input, shape index: {}]
  %s4 = inlined_call_operand.vmem [shape: f32[1,128], index: 4, kind: input, shape index: {}]
  %s5 = inlined_call_operand.hbm [shape: f32[2,128], index: 5, kind: output, shape index: {}]
  %s6 = sld [smem:[#allocation0]]
  $region38: #{animal_reid_forward.1} parent=0
    _
  %s8 = ssub.s32 1, %s6
  %s9 = scalar_select 0, %s8, %s6
  $region1: #{animal_reid_forward.1} parent=0
    #allocation3 [shape = 'u8[1024]{0}', space=vmem, size = 0x400, scoped, tag = 'output window, operand 0, single buffered']
    #allocation4 [shape = 's32[1]{0}', space=sflag, size = 0x4, scoped, tag = 'scoped memory for animal_reid_forward.1']
    %10 = vsyncpa [#allocation4], 0
    // Predicated region
    $region2: #{animal_reid_forward.1} parent=1 // pred_check
      _
    $region3: #{animal_reid_forward.1} parent=1 // pred_check_branch
      %12 = sbr.rel (0) target = $region5
    $region4: #{animal_reid_forward.1} parent=1 // pred_region
      _
    $region5: #{animal_reid_forward.1} parent=1 // pred_fallthru
      _
    // Predicated region
    $region6: #{animal_reid_forward.1} parent=1 // pred_check
      _
    $region7: #{animal_reid_forward.1} parent=1 // pred_check_branch
      %14 = sbr.rel (0) target = $region9
    $region8: #{animal_reid_forward.1} parent=1 // pred_region
      _
    $region9: #{animal_reid_forward.1} parent=1 // pred_fallthru
      _
    // Predicated region
    $region10: #{animal_reid_forward.1} parent=1 // pred_check
      _
    $region11: #{animal_reid_forward.1} parent=1 // pred_check_branch
      %16 = sbr.rel (0) target = $region13
    $region12: #{animal_reid_forward.1} parent=1 // pred_region
      _
    $region13: #{animal_reid_forward.1} parent=1 // pred_fallthru
      _
    // Predicated region
    $region14: #{animal_reid_forward.1} parent=1 // pred_check
      _
    $region15: #{animal_reid_forward.1} parent=1 // pred_check_branch
      %18 = sbr.rel (0) target = $region17
    $region16: #{animal_reid_forward.1} parent=1 // pred_region
      _
    $region17: #{animal_reid_forward.1} parent=1 // pred_fallthru
      _
    // Predicated region
    $region18: #{animal_reid_forward.1} parent=1 // pred_check
      _
    $region19: #{animal_reid_forward.1} parent=1 // pred_check_branch
      %20 = sbr.rel (0) target = $region21
    $region20: #{animal_reid_forward.1} parent=1 // pred_region
      _
    $region21: #{animal_reid_forward.1} parent=1 // pred_fallthru
      _
    %p22 = scmp.eq.s32.totalorder 0, 0
    // Predicated region
    $region22: #{animal_reid_forward.1} parent=1 // pred_check
      %p23 = pneg %p22
    $region23: #{animal_reid_forward.1} parent=1 // pred_check_branch
      %25 = sbr.rel (%p23) target = $region25
    $region24: #{animal_reid_forward.1} parent=1 // pred_region
      %vm26 = vcmask 386048
      %27 = vst.msk [vmem:[#allocation2] sm:$0x3] %vm26, 0.0
    $region25: #{animal_reid_forward.1} parent=1 // pred_fallthru
      _
    %v28 = vld [vmem:[#allocation2] sm:$0x3]
    %v29 = vld [vmem:[%s0] sm:$0xf]
    %v30 = vld [vmem:[%s0 + $0x4] sm:$0xf]
    %v31 = vld [vmem:[%s0 + $0x8] sm:$0xf]
    %v32 = vld [vmem:[%s0 + $0xc] sm:$0xf]
    %v33 = vunpack.c.l.bf16 %v29
    %v34 = vunpack.c.l.bf16 %v30
    %v35 = vunpack.c.l.bf16 %v31
    %v36 = vunpack.c.l.bf16 %v32
    %vm37 = vcmask 392192
    %v38 = vsel %vm37, %v33, 0.0
    %v39 = vsel %vm37, %v34, 0.0
    %v40 = vadd.f32 %v38, %v39
    %v41 = vrot.slane %v40, 4
    %v42 = vadd.f32 %v40, %v41
    %v43 = vrot.slane %v42, 2
    %v44 = vadd.f32 %v42, %v43
    %v45 = vrot.slane %v44, 1
    %v46 = vadd.f32 %v44, %v45
    %v47 = vsel %vm37, %v35, 0.0
    %v48 = vsel %vm37, %v36, 0.0
    %v49 = vadd.f32 %v47, %v48
    %v50 = vrot.slane %v49, 4
    %v51 = vadd.f32 %v49, %v50
    %v52 = vrot.slane %v51, 2
    %v53 = vadd.f32 %v51, %v52
    %v54 = vrot.slane %v53, 1
    %v55 = vadd.f32 %v53, %v54
    %vm58 = vcmask 1041409
    %v59 = vsel %vm58, %v55, %v46
    %v61 = vadd.f32 %v28, %v59
    %vm62 = vcmask 386048
    %63 = vst.msk [vmem:[#allocation2] sm:$0x3] %vm62, %v61
    // Predicated region
    $region26: #{animal_reid_forward.1} parent=1 // pred_check
      %p64 = pneg %p22
    $region27: #{animal_reid_forward.1} parent=1 // pred_check_branch
      %66 = sbr.rel (%p64) target = $region29
    $region28: #{animal_reid_forward.1} parent=1 // pred_region
      %v67 = vld [vmem:[#allocation2] sm:$0x3]
      %v68 = vmul.f32 %v67, 0.0625
      %v69 = vld [vmem:[%s1] sm:$0xff]
      %v70 = vld [vmem:[%s1 + $0x8] sm:$0xff]
      %v71 = vld [vmem:[%s1 + $0x10] sm:$0xff]
      %v72 = vld [vmem:[%s1 + $0x18] sm:$0xff]
      %v73 = vld [vmem:[%s1 + $0x20] sm:$0xff]
      %v74 = vld [vmem:[%s1 + $0x28] sm:$0xff]
      %v75 = vld [vmem:[%s2] sm:$0x1]
      %v77 = vlaneseq
      %v78 = vshrl.u32 %v77, 7
      %v79 = vsub.s32 0, %v78
      %v80 = vrot.slane %v75, %v79
      %v83 = vsel %vm37, %v68, 0
      %85 = vmatprep.subr.mxu0 0.0
      %86 = vmatpush1.msra.mxu0 0.0
      %87 = vmatprep.subr.mxu0 0.0
      %88 = vmatpush1.msra.mxu0 0.0
      %89 = vmatprep.subr.mxu0 0.0
      %90 = vmatpush1.msra.mxu0 0.0
      %91 = vmatprep.subr.mxu0 0.0
      %92 = vmatpush1.msra.mxu0 0.0
      %93 = vmatprep.subr.mxu0 0.0
      %94 = vmatpush1.msra.mxu0 0.0
      %95 = vmatprep.subr.mxu0 0.0
      %96 = vmatpush1.msra.mxu0 0.0
      %97 = vmatprep.subr.mxu0 0.0
      %98 = vmatpush1.msra.mxu0 0.0
      %99 = vmatprep.subr.mxu0 0.0
      %100 = vmatpush1.msra.mxu0 0.0
      %101 = vmatprep.subr.mxu0 0.0
      %102 = vmatpush1.msra.mxu0 0.0
      %103 = vmatprep.subr.mxu0 0.0
      %104 = vmatpush1.msra.mxu0 0.0
      %105 = vmatprep.subr.mxu0 0.0
      %106 = vmatpush1.msra.mxu0 %v74
      %107 = vmatprep.subr.mxu0 0.0
      %108 = vmatpush1.msra.mxu0 %v73
      %109 = vmatprep.subr.mxu0 0.0
      %110 = vmatpush1.msra.mxu0 %v72
      %111 = vmatprep.subr.mxu0 0.0
      %112 = vmatpush1.msra.mxu0 %v71
      %113 = vmatprep.subr.mxu0 0.0
      %114 = vmatpush1.msra.mxu0 %v70
      %115 = vmatprep.subr.mxu0 0.0
      %116 = vmatpush1.msra.mxu0 %v69
      %117 = vmatprep.subr.mxu0 0.0
      %118 = vmatpush2.msra.mxu0 0.0
      %119 = vmatprep.subr.mxu0 0.0
      %120 = vmatpush2.msra.mxu0 0.0
      %121 = vmatprep.subr.mxu0 0.0
      %122 = vmatpush2.msra.mxu0 0.0
      %123 = vmatprep.subr.mxu0 0.0
      %124 = vmatpush2.msra.mxu0 0.0
      %125 = vmatprep.subr.mxu0 0.0
      %126 = vmatpush2.msra.mxu0 0.0
      %127 = vmatprep.subr.mxu0 0.0
      %128 = vmatpush2.msra.mxu0 0.0
      %129 = vmatprep.subr.mxu0 0.0
      %130 = vmatpush2.msra.mxu0 0.0
      %131 = vmatprep.subr.mxu0 0.0
      %132 = vmatpush2.msra.mxu0 0.0
      %133 = vmatprep.subr.mxu0 0.0
      %134 = vmatpush2.msra.mxu0 0.0
      %135 = vmatprep.subr.mxu0 0.0
      %136 = vmatpush2.msra.mxu0 0.0
      %137 = vmatprep.subr.mxu0 0.0
      %138 = vmatpush2.msra.mxu0 0.0
      %139 = vmatprep.subr.mxu0 0.0
      %140 = vmatpush2.msra.mxu0 0.0
      %141 = vmatprep.subr.mxu0 0.0
      %142 = vmatpush2.msra.mxu0 0.0
      %143 = vmatprep.subr.mxu0 0.0
      %144 = vmatpush2.msra.mxu0 0.0
      %145 = vmatprep.subr.mxu0 0.0
      %146 = vmatpush2.msra.mxu0 0.0
      %147 = vmatprep.subr.mxu0 0.0
      %148 = vmatpush2.msra.mxu0 0.0
      %149 = vmatprep.mubr.f32.mxu0 0.0
      %150 = vmatmul.mubr.f32.gmra.mxu0 %v83
      %v151 = vpop.f32.mrf.mxu0
      %v152 = vadd.f32 %v80, %v151
      %v153 = vpop.f32.mrf.mxu0
      %154 = vdwg.mxu0
      %v155 = vpack.c.bf16 %v152, %v152
      %v156 = vld [vmem:[%s3] sm:$0xf]
      %v157 = vld [vmem:[%s3 + $0x4] sm:$0xf]
      %v158 = vld [vmem:[%s3 + $0x8] sm:$0xf]
      %v159 = vld [vmem:[%s3 + $0xc] sm:$0xf]
      %v160 = vld [vmem:[%s3 + $0x10] sm:$0xf]
      %v161 = vld [vmem:[%s3 + $0x14] sm:$0xf]
      %v162 = vld [vmem:[%s3 + $0x18] sm:$0xf]
      %v163 = vld [vmem:[%s3 + $0x1c] sm:$0xf]
      %v164 = vld [vmem:[%s3 + $0x20] sm:$0xf]
      %v165 = vld [vmem:[%s3 + $0x24] sm:$0xf]
      %v166 = vld [vmem:[%s3 + $0x28] sm:$0xf]
      %v167 = vld [vmem:[%s3 + $0x2c] sm:$0xf]
      %v168 = vld [vmem:[%s3 + $0x30] sm:$0xf]
      %v169 = vld [vmem:[%s3 + $0x34] sm:$0xf]
      %v170 = vld [vmem:[%s3 + $0x38] sm:$0xf]
      %v171 = vld [vmem:[%s3 + $0x3c] sm:$0xf]
      %v172 = vld [vmem:[%s4] sm:$0x1]
      %v174 = vlaneseq
      %v175 = vshrl.u32 %v174, 7
      %v176 = vsub.s32 0, %v175
      %v177 = vrot.slane %v172, %v176
      %v195 = vunpack.c.l.b16 %v156
      %v196 = vunpack.c.l.b16 %v157
      %v197 = vunpack.c.l.b16 %v158
      %v198 = vunpack.c.l.b16 %v159
      %v199 = vunpack.c.l.b16 %v160
      %v200 = vunpack.c.l.b16 %v161
      %v201 = vunpack.c.l.b16 %v162
      %v202 = vunpack.c.l.b16 %v163
      %v203 = vunpack.c.l.b16 %v164
      %v204 = vunpack.c.l.b16 %v165
      %v205 = vunpack.c.l.b16 %v166
      %v206 = vunpack.c.l.b16 %v167
      %v207 = vunpack.c.l.b16 %v168
      %v208 = vunpack.c.l.b16 %v169
      %v209 = vunpack.c.l.b16 %v170
      %v210 = vunpack.c.l.b16 %v171
      %v211 = vpack.c.b16 %v196, %v195
      %v212 = vpack.c.b16 %v198, %v197
      %v213 = vpack.c.b16 %v200, %v199
      %v214 = vpack.c.b16 %v202, %v201
      %v215 = vpack.c.b16 %v204, %v203
      %v216 = vpack.c.b16 %v206, %v205
      %v217 = vpack.c.b16 %v208, %v207
      %v218 = vpack.c.b16 %v210, %v209
      %227 = vmatprep.subr.bf16.mxu0 0
      %228 = vmatpush1.bf16.msra.mxu0 %v218
      %229 = vmatprep.subr.bf16.mxu0 0
      %230 = vmatpush1.bf16.msra.mxu0 %v217
      %231 = vmatprep.subr.bf16.mxu0 0
      %232 = vmatpush1.bf16.msra.mxu0 %v216
      %233 = vmatprep.subr.bf16.mxu0 0
      %234 = vmatpush1.bf16.msra.mxu0 %v215
      %235 = vmatprep.subr.bf16.mxu0 0
      %236 = vmatpush1.bf16.msra.mxu0 %v214
      %237 = vmatprep.subr.bf16.mxu0 0
      %238 = vmatpush1.bf16.msra.mxu0 %v213
      %239 = vmatprep.subr.bf16.mxu0 0
      %240 = vmatpush1.bf16.msra.mxu0 %v212
      %241 = vmatprep.subr.bf16.mxu0 0
      %242 = vmatpush1.bf16.msra.mxu0 %v211
      %243 = vmatprep.subr.bf16.mxu0 0
      %244 = vmatpush2.bf16.msra.mxu0 0
      %245 = vmatprep.subr.bf16.mxu0 0
      %246 = vmatpush2.bf16.msra.mxu0 0
      %247 = vmatprep.subr.bf16.mxu0 0
      %248 = vmatpush2.bf16.msra.mxu0 0
      %249 = vmatprep.subr.bf16.mxu0 0
      %250 = vmatpush2.bf16.msra.mxu0 0
      %251 = vmatprep.subr.bf16.mxu0 0
      %252 = vmatpush2.bf16.msra.mxu0 0
      %253 = vmatprep.subr.bf16.mxu0 0
      %254 = vmatpush2.bf16.msra.mxu0 0
      %255 = vmatprep.subr.bf16.mxu0 0
      %256 = vmatpush2.bf16.msra.mxu0 0
      %257 = vmatprep.subr.bf16.mxu0 0
      %258 = vmatpush2.bf16.msra.mxu0 0
      %259 = vmatprep.mubr.bf16.mxu0 0
      %260 = vmatmul.mubr.bf16.gmra.mxu0 %v155
      %v261 = vpop.f32.mrf.mxu0
      %v262 = vadd.f32 %v177, %v261
      %v263 = vpop.f32.mrf.mxu0
      %v264 = vpop.f32.mrf.mxu0
      %v265 = vpop.f32.mrf.mxu0
      %266 = vdwg.mxu0
      %267 = vst [vmem:[#allocation3] sm:$0x3] %v262
    $region29: #{animal_reid_forward.1} parent=1 // pred_fallthru
      _
    // Predicated region
    $region30: #{animal_reid_forward.1} parent=1 // pred_check
      _
    $region31: #{animal_reid_forward.1} parent=1 // pred_check_branch
      %269 = sbr.rel (0) target = $region33
    $region32: #{animal_reid_forward.1} parent=1 // pred_region
      %s271 = ssub.s32 32, 32
      %272 = vsyncadd [#allocation4], %s271
      %s274 = sshll.u32 [#allocation3], 4
      %s275 = int_to_ptr.vmem [resolvable:$true] %s274
      %277 = dma.vmem_to_hbm [thread:$0]  %s275, 32, %s5, [#allocation4]
    $region33: #{animal_reid_forward.1} parent=1 // pred_fallthru
      _
    // Predicated region
    $region34: #{animal_reid_forward.1} parent=1 // pred_check
      _
    $region35: #{animal_reid_forward.1} parent=1 // pred_check_branch
      %279 = sbr.rel (0) target = $region37
    $region36: #{animal_reid_forward.1} parent=1 // pred_region
      %280 = dma.done [#allocation4], 32
    $region37: #{animal_reid_forward.1} parent=1 // pred_fallthru
      _
    %281 = vsyncpa [#allocation4], 1

</llo_original>
